<compile_context>
chip_gen: v7x
topology: tpu7x:2x2x1
jax: 0.10.0
libtpu: 0.0.40
codegen_flags: <defaults>
</compile_context>

<pallas_src>
import functools
from typing import NamedTuple, Optional

import jax
import jax.numpy as jnp
from jax.experimental import pallas as pl
from jax.experimental.pallas import tpu as pltpu


def _round_up(x: int, m: int) -> int:
    return (x + m - 1) // m * m


def _vmem_capacity_bytes() -> int:
    """Physical VMEM per core; falls back to the smallest current gen (v7x)."""
    try:
        return int(pltpu.get_tpu_info().vmem_capacity_bytes)
    except Exception:
        return 64 << 20


class PackedParams(NamedTuple):
    w_first: jax.Array            # [P_in, P_h]        bf16
    b_hidden: jax.Array           # [n_hidden, 1, P_h] f32
    w_mid: Optional[jax.Array]    # [n_mid, P_h, P_h]  bf16 (None if n_mid==0)
    w_last: jax.Array             # [P_h, P_out]       bf16
    b_last: jax.Array             # [1, P_out]         f32
    output_size: int


def pack_params(weights, biases) -> PackedParams:
    """Pad/cast/stack parameters once, off the per-call forward path.

    weights: list of [in_f, out_f] f32 (hidden layers, then the output layer)
    biases:  list of [1, out_f]  f32
    """
    n_layers = len(weights)
    assert n_layers >= 2, "need at least one hidden layer plus the output layer"
    input_size = int(weights[0].shape[0])
    hidden_size = int(weights[0].shape[1])
    output_size = int(weights[-1].shape[1])
    p_in = _round_up(input_size, 128)
    p_h = _round_up(hidden_size, 128)
    p_out = _round_up(output_size, 128)
    n_mid = n_layers - 2

    def pad2(a, rows, cols):
        a = jnp.asarray(a, jnp.float32)
        return jnp.pad(a, ((0, rows - a.shape[0]), (0, cols - a.shape[1])))

    w_first = pad2(weights[0], p_in, p_h).astype(jnp.bfloat16)
    w_last = pad2(weights[-1], p_h, p_out).astype(jnp.bfloat16)
    w_mid = (
        jnp.stack([pad2(w, p_h, p_h).astype(jnp.bfloat16) for w in weights[1:-1]])
        if n_mid > 0 else None
    )
    b_hidden = jnp.stack([pad2(b, 1, p_h) for b in biases[:-1]])   # f32
    b_last = pad2(biases[-1], 1, p_out)                            # f32
    return PackedParams(w_first, b_hidden, w_mid, w_last, b_last, output_size)


def _make_mlp_kernel(n_mid: int, activation_fn: str):
    """Fused-MLP kernel body for a fixed (static) layer count."""
    if activation_fn == "relu":
        act = lambda h: jnp.maximum(h, 0.0)
    else:  # default tanh (matches the PyTorch module's else-branch)
        act = jnp.tanh

    def kernel(*refs):
        if n_mid > 0:
            x_ref, wf_ref, bh_ref, wm_ref, wl_ref, bl_ref, o_ref = refs
        else:
            x_ref, wf_ref, bh_ref, wl_ref, bl_ref, o_ref = refs
            wm_ref = None
        # First hidden layer: bf16 x bf16 on the MXU, f32 accumulation.
        h = jnp.dot(x_ref[...], wf_ref[...], preferred_element_type=jnp.float32)
        h = act(h + bh_ref[0]).astype(jnp.bfloat16)   # epilogue f32, carry bf16
        # Middle hidden layers (hidden -> hidden).
        for i in range(n_mid):
            acc = jnp.dot(h, wm_ref[i], preferred_element_type=jnp.float32)
            h = act(acc + bh_ref[i + 1]).astype(jnp.bfloat16)
        # Output layer: linear, f32 result, lane-dense P_out-wide store.
        out = jnp.dot(h, wl_ref[...], preferred_element_type=jnp.float32)
        o_ref[...] = (out + bl_ref[...]).astype(o_ref.dtype)

    return kernel


@functools.partial(
    jax.jit, static_argnames=("output_size", "activation_fn", "block_batch")
)
def _mlp_forward_packed(x, w_first, b_hidden, w_mid, w_last, b_last, *,
                        output_size, activation_fn, block_batch):
    batch, in_f = x.shape
    p_in, p_h = w_first.shape
    p_out = w_last.shape[1]
    n_hidden = b_hidden.shape[0]
    n_mid = 0 if w_mid is None else w_mid.shape[0]
    assert in_f <= p_in and n_mid == n_hidden - 1

    # Batch tile: multiple of 16 (bf16 sublane packing); prefer 512-row tiles.
    if batch >= block_batch:
        tb = _round_up(block_batch, 16)
    else:
        tb = _round_up(max(batch, 16), 16)
    batch_pad = _round_up(batch, tb)
    num_tiles = batch_pad // tb

    # Lane-dense, sublane-padded bf16 input slab (halves input DMA bytes).
    x_pad = jnp.pad(
        x.astype(jnp.bfloat16), ((0, batch_pad - batch), (0, p_in - in_f))
    )

    kernel = _make_mlp_kernel(n_mid, activation_fn)

    # Resident parameters: constant block index + single buffer.
    resident = functools.partial(pl.BlockSpec, pipeline_mode=pl.Buffered(1))
    in_specs = [
        pl.BlockSpec((tb, p_in), lambda i: (i, 0)),          # streamed x tile
        resident((p_in, p_h), lambda i: (0, 0)),              # w_first
        resident((n_hidden, 1, p_h), lambda i: (0, 0, 0)),    # hidden biases
    ]
    operands = [x_pad, w_first, b_hidden]
    if n_mid > 0:
        in_specs.append(resident((n_mid, p_h, p_h), lambda i: (0, 0, 0)))
        operands.append(w_mid)
    in_specs += [
        resident((p_h, p_out), lambda i: (0, 0)),              # w_last
        resident((1, p_out), lambda i: (0, 0)),                # b_last
    ]
    operands += [w_last, b_last]

    # ---- VMEM budget (generation-aware, no double-double counting) --------
    x_tile_bytes = tb * p_in * 2              # bf16, double-buffered by Pallas
    o_tile_bytes = tb * p_out * 4             # f32,  double-buffered by Pallas
    w_bytes = (p_in * p_h + n_mid * p_h * p_h + p_h * p_out) * 2  # bf16, x1
    b_bytes = (n_hidden * p_h + p_out) * 4                        # f32,  x1
    h_bytes = tb * p_h * 6                     # f32 epilogue + bf16 carry
    vmem_needed = 2 * (x_tile_bytes + o_tile_bytes) + w_bytes + b_bytes + h_bytes
    vmem_cap = int(_vmem_capacity_bytes() * 0.78)  # ~50 MiB v7x, ~100 MiB v6e/v5e
    vmem_limit = min(max(int(1.4 * vmem_needed), 8 << 20), vmem_cap)
    # TODO(synk): when w_bytes alone exceeds ~0.7*vmem_cap (large hidden on
    # v7x), switch to streaming mid-layer weights over an inner 'arbitrary'
    # grid axis with the activation carried in VMEM scratch, instead of
    # relying on full weight residency.

    # Megacore only when there is enough batch tiling to amortize per-core
    # weight residency / DMA.
    semantics = ("parallel",) if num_tiles >= 4 else ("arbitrary",)

    out_pad = pl.pallas_call(
        kernel,
        out_shape=jax.ShapeDtypeStruct((batch_pad, p_out), jnp.float32),
        grid=(num_tiles,),
        in_specs=in_specs,
        out_specs=pl.BlockSpec((tb, p_out), lambda i: (i, 0)),
        compiler_params=pltpu.CompilerParams(
            dimension_semantics=semantics,
            vmem_limit_bytes=vmem_limit,
        ),
    )(*operands)

    # Strip batch / lane padding outside the kernel.
    return out_pad[:batch, :output_size]


def mlp_forward(x, params: PackedParams, activation_fn="tanh", block_batch=512):
    """Fused MLP forward pass (single batch-gridded Pallas TPU kernel)."""
    return _mlp_forward_packed(
        x, params.w_first, params.b_hidden, params.w_mid, params.w_last,
        params.b_last, output_size=params.output_size,
        activation_fn=activation_fn, block_batch=block_batch,
    )


def init_params(key, input_size, no_hiddenlayers, hidden_size, output_size):
    """Xavier-normal-ish weights, bias = 0.01 (mirrors xavier_initialize)."""
    dims = [input_size] + [hidden_size] * no_hiddenlayers + [output_size]
    weights, biases = [], []
    for i in range(len(dims) - 1):
        key, sub = jax.random.split(key)
        fan_in, fan_out = dims[i], dims[i + 1]
        std = (2.0 / (fan_in + fan_out)) ** 0.5
        w = jax.random.normal(sub, (fan_in, fan_out), dtype=jnp.float32) * std
        b = jnp.full((1, fan_out), 0.01, dtype=jnp.float32)
        weights.append(w)
        biases.append(b)
    return tuple(weights), tuple(biases)


def mlp_forward_reference(x, weights, biases, activation_fn="tanh",
                          param_dtype=jnp.float32):
    """Pure-JAX reference. param_dtype=bf16 mirrors the kernel's MXU feed."""
    act = (lambda h: jnp.maximum(h, 0.0)) if activation_fn == "relu" else jnp.tanh
    h = x.astype(jnp.float32)
    n = len(weights)
    for i, (w, b) in enumerate(zip(weights, biases)):
        h = jnp.dot(
            h.astype(param_dtype), w.astype(param_dtype),
            preferred_element_type=jnp.float32,
        ) + b.astype(jnp.float32)
        if i < n - 1:
            h = act(h)
    return h


if __name__ == "__main__":
    # Small shapes consistent with the module's forward (flat feature vectors).
    batch = 8
    input_size = 16
    no_hiddenlayers = 3
    hidden_size = 32
    output_size = 1
    activation_fn = "tanh"

    key = jax.random.PRNGKey(0)
    key, xkey = jax.random.split(key)
    x = jax.random.normal(xkey, (batch, input_size), dtype=jnp.float32)

    weights, biases = init_params(
        key, input_size, no_hiddenlayers, hidden_size, output_size
    )

    # Packing (pad + cast + stack) is hoisted off the per-call forward path.
    packed = pack_params(weights, biases)

    out = mlp_forward(x, packed, activation_fn=activation_fn)
    out = jax.block_until_ready(out)

    assert out.shape == (batch, output_size)

    # Tight check vs a reference that mirrors the kernel's bf16-MXU / f32-acc.
    ref_bf16 = mlp_forward_reference(
        x, weights, biases, activation_fn, param_dtype=jnp.bfloat16
    )
    assert jnp.allclose(out, ref_bf16, atol=2e-3, rtol=2e-3), "mismatch vs bf16 ref"

    # Looser check vs the exact f32 math of the original PyTorch module.
    ref_f32 = mlp_forward_reference(
        x, weights, biases, activation_fn, param_dtype=jnp.float32
    )
    assert jnp.allclose(out, ref_f32, atol=3e-2, rtol=3e-2), "mismatch vs f32 ref"

    print("KERNEL_OK")
</pallas_src>

<mosaic_0001>
module attributes {stable_mosaic.version = 11 : i64} {
  func.func @kernel(%arg0: i32, %arg1: memref<16x128xbf16, #tpu.memory_space<vmem>>, %arg2: memref<128x128xbf16, #tpu.memory_space<vmem>>, %arg3: memref<3x1x128xf32, #tpu.memory_space<vmem>>, %arg4: memref<2x128x128xbf16, #tpu.memory_space<vmem>>, %arg5: memref<128x128xbf16, #tpu.memory_space<vmem>>, %arg6: memref<1x128xf32, #tpu.memory_space<vmem>>, %arg7: memref<16x128xf32, #tpu.memory_space<vmem>>) attributes {dimension_semantics = [#tpu.dimension_semantics<arbitrary>], iteration_bounds = array<i64: 1>, scalar_prefetch = 0 : i64, scratch_operands = 0 : i64, tpu.core_type = #tpu.core_type<tc>, window_params = [{transform_indices = @transform_0, window_bounds = array<i64: 16, 128>}, {pipeline_mode = #tpu.pipeline_mode<synchronous>, transform_indices = @transform_1, window_bounds = array<i64: 128, 128>}, {pipeline_mode = #tpu.pipeline_mode<synchronous>, transform_indices = @transform_2, window_bounds = array<i64: 3, 1, 128>}, {pipeline_mode = #tpu.pipeline_mode<synchronous>, transform_indices = @transform_3, window_bounds = array<i64: 2, 128, 128>}, {pipeline_mode = #tpu.pipeline_mode<synchronous>, transform_indices = @transform_4, window_bounds = array<i64: 128, 128>}, {pipeline_mode = #tpu.pipeline_mode<synchronous>, transform_indices = @transform_5, window_bounds = array<i64: 1, 128>}, {transform_indices = @transform_6, window_bounds = array<i64: 16, 128>}]} {
    %c0 = arith.constant 0 : index
    %c0_0 = arith.constant 0 : index
    %0 = vector.load %arg1[%c0, %c0_0] : memref<16x128xbf16, #tpu.memory_space<vmem>>, vector<16x128xbf16>
    %c0_1 = arith.constant 0 : index
    %c0_2 = arith.constant 0 : index
    %1 = vector.load %arg2[%c0_1, %c0_2] : memref<128x128xbf16, #tpu.memory_space<vmem>>, vector<128x128xbf16>
    %cst = arith.constant dense<0.000000e+00> : vector<16x128xf32>
    %2 = tpu.matmul %0, %1, %cst {dimension_numbers = #tpu.dot_dimension_numbers<[1], [0], [0], [1], [0, 0, 1, 1], [], []>} : vector<16x128xbf16>, vector<128x128xbf16>, vector<16x128xf32> -> vector<16x128xf32>
    %c0_3 = arith.constant 0 : index
    %c0_4 = arith.constant 0 : index
    %c0_5 = arith.constant 0 : index
    %3 = vector.load %arg3[%c0_3, %c0_4, %c0_5] : memref<3x1x128xf32, #tpu.memory_space<vmem>>, vector<1x1x128xf32>
    %4 = vector.shape_cast %3 : vector<1x1x128xf32> to vector<1x128xf32>
    %5 = vector.broadcast %4 : vector<1x128xf32> to vector<16x128xf32>
    %6 = arith.addf %2, %5 : vector<16x128xf32>
    %7 = math.tanh %6 : vector<16x128xf32>
    %8 = arith.truncf %7 : vector<16x128xf32> to vector<16x128xbf16>
    %c0_6 = arith.constant 0 : index
    %c0_7 = arith.constant 0 : index
    %c0_8 = arith.constant 0 : index
    %9 = vector.load %arg4[%c0_6, %c0_7, %c0_8] : memref<2x128x128xbf16, #tpu.memory_space<vmem>>, vector<1x128x128xbf16>
    %10 = vector.shape_cast %9 : vector<1x128x128xbf16> to vector<128x128xbf16>
    %cst_9 = arith.constant dense<0.000000e+00> : vector<16x128xf32>
    %11 = tpu.matmul %8, %10, %cst_9 {dimension_numbers = #tpu.dot_dimension_numbers<[1], [0], [0], [1], [0, 0, 1, 1], [], []>} : vector<16x128xbf16>, vector<128x128xbf16>, vector<16x128xf32> -> vector<16x128xf32>
    %c1 = arith.constant 1 : index
    %c0_10 = arith.constant 0 : index
    %c0_11 = arith.constant 0 : index
    %12 = vector.load %arg3[%c1, %c0_10, %c0_11] : memref<3x1x128xf32, #tpu.memory_space<vmem>>, vector<1x1x128xf32>
    %13 = vector.shape_cast %12 : vector<1x1x128xf32> to vector<1x128xf32>
    %14 = vector.broadcast %13 : vector<1x128xf32> to vector<16x128xf32>
    %15 = arith.addf %11, %14 : vector<16x128xf32>
    %16 = math.tanh %15 : vector<16x128xf32>
    %17 = arith.truncf %16 : vector<16x128xf32> to vector<16x128xbf16>
    %c1_12 = arith.constant 1 : index
    %c0_13 = arith.constant 0 : index
    %c0_14 = arith.constant 0 : index
    %18 = vector.load %arg4[%c1_12, %c0_13, %c0_14] : memref<2x128x128xbf16, #tpu.memory_space<vmem>>, vector<1x128x128xbf16>
    %19 = vector.shape_cast %18 : vector<1x128x128xbf16> to vector<128x128xbf16>
    %cst_15 = arith.constant dense<0.000000e+00> : vector<16x128xf32>
    %20 = tpu.matmul %17, %19, %cst_15 {dimension_numbers = #tpu.dot_dimension_numbers<[1], [0], [0], [1], [0, 0, 1, 1], [], []>} : vector<16x128xbf16>, vector<128x128xbf16>, vector<16x128xf32> -> vector<16x128xf32>
    %c2 = arith.constant 2 : index
    %c0_16 = arith.constant 0 : index
    %c0_17 = arith.constant 0 : index
    %21 = vector.load %arg3[%c2, %c0_16, %c0_17] : memref<3x1x128xf32, #tpu.memory_space<vmem>>, vector<1x1x128xf32>
    %22 = vector.shape_cast %21 : vector<1x1x128xf32> to vector<1x128xf32>
    %23 = vector.broadcast %22 : vector<1x128xf32> to vector<16x128xf32>
    %24 = arith.addf %20, %23 : vector<16x128xf32>
    %25 = math.tanh %24 : vector<16x128xf32>
    %26 = arith.truncf %25 : vector<16x128xf32> to vector<16x128xbf16>
    %c0_18 = arith.constant 0 : index
    %c0_19 = arith.constant 0 : index
    %27 = vector.load %arg5[%c0_18, %c0_19] : memref<128x128xbf16, #tpu.memory_space<vmem>>, vector<128x128xbf16>
    %cst_20 = arith.constant dense<0.000000e+00> : vector<16x128xf32>
    %28 = tpu.matmul %26, %27, %cst_20 {dimension_numbers = #tpu.dot_dimension_numbers<[1], [0], [0], [1], [0, 0, 1, 1], [], []>} : vector<16x128xbf16>, vector<128x128xbf16>, vector<16x128xf32> -> vector<16x128xf32>
    %c0_21 = arith.constant 0 : index
    %c0_22 = arith.constant 0 : index
    %29 = vector.load %arg6[%c0_21, %c0_22] : memref<1x128xf32, #tpu.memory_space<vmem>>, vector<1x128xf32>
    %30 = vector.broadcast %29 : vector<1x128xf32> to vector<16x128xf32>
    %31 = arith.addf %28, %30 : vector<16x128xf32>
    %c0_23 = arith.constant 0 : index
    %c0_24 = arith.constant 0 : index
    %32 = vector.load %arg7[%c0_23, %c0_24] : memref<16x128xf32, #tpu.memory_space<vmem>>, vector<16x128xf32>
    tpu.vector_store %arg7[%c0_23, %c0_24], %31 {strides = array<i32>} : memref<16x128xf32, #tpu.memory_space<vmem>>, vector<16x128xf32>,
    return
  }
  func.func @transform_0(%arg0: i32) -> (i32, i32) {
    %c0_i32 = arith.constant 0 : i32
    %c0_i32_0 = arith.constant 0 : i32
    return %arg0, %c0_i32 : i32, i32
  }
  func.func @transform_1(%arg0: i32) -> (i32, i32) {
    %c0_i32 = arith.constant 0 : i32
    %c0_i32_0 = arith.constant 0 : i32
    %c0_i32_1 = arith.constant 0 : i32
    return %c0_i32, %c0_i32_0 : i32, i32
  }
  func.func @transform_2(%arg0: i32) -> (i32, i32, i32) {
    %c0_i32 = arith.constant 0 : i32
    %c0_i32_0 = arith.constant 0 : i32
    %c0_i32_1 = arith.constant 0 : i32
    %c0_i32_2 = arith.constant 0 : i32
    return %c0_i32, %c0_i32_0, %c0_i32_1 : i32, i32, i32
  }
  func.func @transform_3(%arg0: i32) -> (i32, i32, i32) {
    %c0_i32 = arith.constant 0 : i32
    %c0_i32_0 = arith.constant 0 : i32
    %c0_i32_1 = arith.constant 0 : i32
    %c0_i32_2 = arith.constant 0 : i32
    return %c0_i32, %c0_i32_0, %c0_i32_1 : i32, i32, i32
  }
  func.func @transform_4(%arg0: i32) -> (i32, i32) {
    %c0_i32 = arith.constant 0 : i32
    %c0_i32_0 = arith.constant 0 : i32
    %c0_i32_1 = arith.constant 0 : i32
    return %c0_i32, %c0_i32_0 : i32, i32
  }
  func.func @transform_5(%arg0: i32) -> (i32, i32) {
    %c0_i32 = arith.constant 0 : i32
    %c0_i32_0 = arith.constant 0 : i32
    %c0_i32_1 = arith.constant 0 : i32
    return %c0_i32, %c0_i32_0 : i32, i32
  }
  func.func @transform_6(%arg0: i32) -> (i32, i32) {
    %c0_i32 = arith.constant 0 : i32
    %c0_i32_0 = arith.constant 0 : i32
    return %arg0, %c0_i32 : i32, i32
  }
}

</mosaic_0001>

<llo_original>
// kernel: _mlp_forward_packed.1
$region0: #{_mlp_forward_packed.1}
  #allocation0 [shape = 'u32[]', space=smem, size = 0x4, offset = 0x4, fixed_abs, tag = 'smem constant byte address 0x4 - core index']
  #allocation1 [shape = 'u32[144,128]{1,0:T(1,128)}', space=vmem, size = 0x12000, scoped, tag = 'internal scratch']
  %s0 = inlined_call_operand.vmem [shape: bf16[16,128], index: 0, kind: input, shape index: {}]
  %s1 = inlined_call_operand.hbm [shape: bf16[128,128], index: 1, kind: input, shape index: {}]
  %s2 = inlined_call_operand.vmem [shape: f32[3,1,128], index: 2, kind: input, shape index: {}]
  %s3 = inlined_call_operand.hbm [shape: bf16[2,128,128], index: 3, kind: input, shape index: {}]
  %s4 = inlined_call_operand.hbm [shape: bf16[128,128], index: 4, kind: input, shape index: {}]
  %s5 = inlined_call_operand.vmem [shape: f32[1,128], index: 5, kind: input, shape index: {}]
  %s6 = inlined_call_operand.vmem [shape: f32[16,128], index: 6, kind: output, shape index: {}]
  %s7 = sld [smem:[#allocation0]]
  $region46: #{_mlp_forward_packed.1} parent=0
    _
  %s9 = ssub.s32 1, %s7
  %s10 = scalar_select 0, %s9, %s7
  $region1: #{_mlp_forward_packed.1} parent=0
    #allocation2 [shape = 'u8[32768]{0}', space=vmem, size = 0x8000, scoped, tag = 'input window, operand 1, single buffered']
    #allocation3 [shape = 's32[1]{0}', space=sflag, size = 0x4, scoped, tag = 'scoped memory for _mlp_forward_packed.1']
    #allocation4 [shape = 'u8[65536]{0}', space=vmem, size = 0x10000, scoped, tag = 'input window, operand 3, single buffered']
    #allocation5 [shape = 's32[1]{0}', space=sflag, size = 0x4, scoped, tag = 'scoped memory for _mlp_forward_packed.1']
    #allocation6 [shape = 'u8[32768]{0}', space=vmem, size = 0x8000, scoped, tag = 'input window, operand 4, single buffered']
    %11 = vsyncpa [#allocation3], 0
    %12 = vsyncpa [#allocation5], 0
    // Predicated region
    $region2: #{_mlp_forward_packed.1} parent=1 // pred_check
      _
    $region3: #{_mlp_forward_packed.1} parent=1 // pred_check_branch
      %14 = sbr.rel (0) target = $region5
    $region4: #{_mlp_forward_packed.1} parent=1 // pred_region
      _
    $region5: #{_mlp_forward_packed.1} parent=1 // pred_fallthru
      _
    // Predicated region
    $region6: #{_mlp_forward_packed.1} parent=1 // pred_check
      _
    $region7: #{_mlp_forward_packed.1} parent=1 // pred_check_branch
      %16 = sbr.rel (0) target = $region9
    $region8: #{_mlp_forward_packed.1} parent=1 // pred_region
      %s18 = ssub.s32 1024, 1024
      %19 = vsyncadd [#allocation3], %s18
      %s20 = sshll.u32 [#allocation2], 4
      %s21 = int_to_ptr.vmem [resolvable:$true] %s20
      %26 = dma.hbm_to_vmem [thread:$0]  %s1, 1024, %s21, [#allocation3], 64, 64, 4
    $region9: #{_mlp_forward_packed.1} parent=1 // pred_fallthru
      _
    // Predicated region
    $region10: #{_mlp_forward_packed.1} parent=1 // pred_check
      _
    $region11: #{_mlp_forward_packed.1} parent=1 // pred_check_branch
      %28 = sbr.rel (0) target = $region13
    $region12: #{_mlp_forward_packed.1} parent=1 // pred_region
      _
    $region13: #{_mlp_forward_packed.1} parent=1 // pred_fallthru
      _
    // Predicated region
    $region14: #{_mlp_forward_packed.1} parent=1 // pred_check
      _
    $region15: #{_mlp_forward_packed.1} parent=1 // pred_check_branch
      %30 = sbr.rel (0) target = $region17
    $region16: #{_mlp_forward_packed.1} parent=1 // pred_region
      %s32 = ssub.s32 2048, 2048
      %33 = vsyncadd [#allocation5], %s32
      %s34 = sshll.u32 [#allocation4], 4
      %s35 = int_to_ptr.vmem [resolvable:$true] %s34
      %40 = dma.hbm_to_vmem [thread:$0]  %s3, 2048, %s35, [#allocation5], 64, 64, 4
    $region17: #{_mlp_forward_packed.1} parent=1 // pred_fallthru
      _
    // Predicated region
    $region18: #{_mlp_forward_packed.1} parent=1 // pred_check
      _
    $region19: #{_mlp_forward_packed.1} parent=1 // pred_check_branch
      %42 = sbr.rel (0) target = $region21
    $region20: #{_mlp_forward_packed.1} parent=1 // pred_region
      %s44 = ssub.s32 1024, 1024
      %45 = vsyncadd [#allocation5], %s44
      %s46 = sshll.u32 [#allocation6], 4
      %s47 = int_to_ptr.vmem [resolvable:$true] %s46
      %52 = dma.hbm_to_vmem [thread:$0]  %s4, 1024, %s47, [#allocation5], 64, 64, 4
    $region21: #{_mlp_forward_packed.1} parent=1 // pred_fallthru
      _
    // Predicated region
    $region22: #{_mlp_forward_packed.1} parent=1 // pred_check
      _
    $region23: #{_mlp_forward_packed.1} parent=1 // pred_check_branch
      %54 = sbr.rel (0) target = $region25
    $region24: #{_mlp_forward_packed.1} parent=1 // pred_region
      _
    $region25: #{_mlp_forward_packed.1} parent=1 // pred_fallthru
      _
    // Predicated region
    $region26: #{_mlp_forward_packed.1} parent=1 // pred_check
      _
    $region27: #{_mlp_forward_packed.1} parent=1 // pred_check_branch
      %56 = sbr.rel (0) target = $region29
    $region28: #{_mlp_forward_packed.1} parent=1 // pred_region
      %57 = dma.done [#allocation3], 1024
    $region29: #{_mlp_forward_packed.1} parent=1 // pred_fallthru
      _
    // Predicated region
    $region30: #{_mlp_forward_packed.1} parent=1 // pred_check
      _
    $region31: #{_mlp_forward_packed.1} parent=1 // pred_check_branch
      %59 = sbr.rel (0) target = $region33
    $region32: #{_mlp_forward_packed.1} parent=1 // pred_region
      %60 = dma.done [#allocation5], 2048
    $region33: #{_mlp_forward_packed.1} parent=1 // pred_fallthru
      _
    // Predicated region
    $region34: #{_mlp_forward_packed.1} parent=1 // pred_check
      _
    $region35: #{_mlp_forward_packed.1} parent=1 // pred_check_branch
      %62 = sbr.rel (0) target = $region37
    $region36: #{_mlp_forward_packed.1} parent=1 // pred_region
      %63 = dma.done [#allocation5], 1024
    $region37: #{_mlp_forward_packed.1} parent=1 // pred_fallthru
      _
    %v65 = vld [vmem:[%s0] sm:$0xf]
    %v66 = vld [vmem:[%s0 + $0x4] sm:$0xf]
    %v67 = vld [vmem:[#allocation2] sm:$0xf]
    %v68 = vld [vmem:[#allocation2 + $0x4] sm:$0xf]
    %v69 = vld [vmem:[#allocation2 + $0x8] sm:$0xf]
    %v70 = vld [vmem:[#allocation2 + $0xc] sm:$0xf]
    %v71 = vld [vmem:[#allocation2 + $0x10] sm:$0xf]
    %v72 = vld [vmem:[#allocation2 + $0x14] sm:$0xf]
    %v73 = vld [vmem:[#allocation2 + $0x18] sm:$0xf]
    %v74 = vld [vmem:[#allocation2 + $0x1c] sm:$0xf]
    %v75 = vld [vmem:[#allocation2 + $0x20] sm:$0xf]
    %v76 = vld [vmem:[#allocation2 + $0x24] sm:$0xf]
    %v77 = vld [vmem:[#allocation2 + $0x28] sm:$0xf]
    %v78 = vld [vmem:[#allocation2 + $0x2c] sm:$0xf]
    %v79 = vld [vmem:[#allocation2 + $0x30] sm:$0xf]
    %v80 = vld [vmem:[#allocation2 + $0x34] sm:$0xf]
    %v81 = vld [vmem:[#allocation2 + $0x38] sm:$0xf]
    %v82 = vld [vmem:[#allocation2 + $0x3c] sm:$0xf]
    %v83 = vld [vmem:[%s2] sm:$0x1]
    %v85 = vlaneseq
    %v86 = vshrl.u32 %v85, 7
    %v87 = vsub.s32 0, %v86
    %v88 = vrot.slane %v83, %v87
    %v92 = vunpack.c.l.b16 %v65
    %v93 = vunpack.c.l.b16 %v66
    %v94 = vpack.c.b16 %v93, %v92
    %v112 = vunpack.c.l.b16 %v67
    %v113 = vunpack.c.l.b16 %v68
    %v114 = vunpack.c.l.b16 %v69
    %v115 = vunpack.c.l.b16 %v70
    %v116 = vunpack.c.l.b16 %v71
    %v117 = vunpack.c.l.b16 %v72
    %v118 = vunpack.c.l.b16 %v73
    %v119 = vunpack.c.l.b16 %v74
    %v120 = vunpack.c.l.b16 %v75
    %v121 = vunpack.c.l.b16 %v76
    %v122 = vunpack.c.l.b16 %v77
    %v123 = vunpack.c.l.b16 %v78
    %v124 = vunpack.c.l.b16 %v79
    %v125 = vunpack.c.l.b16 %v80
    %v126 = vunpack.c.l.b16 %v81
    %v127 = vunpack.c.l.b16 %v82
    %v128 = vpack.c.b16 %v113, %v112
    %v129 = vpack.c.b16 %v115, %v114
    %v130 = vpack.c.b16 %v117, %v116
    %v131 = vpack.c.b16 %v119, %v118
    %v132 = vpack.c.b16 %v121, %v120
    %v133 = vpack.c.b16 %v123, %v122
    %v134 = vpack.c.b16 %v125, %v124
    %v135 = vpack.c.b16 %v127, %v126
    %144 = vmatprep.subr.bf16.mxu0 0
    %145 = vmatpush1.bf16.msra.mxu0 %v128
    %146 = vmatprep.subr.bf16.mxu0 0
    %147 = vmatpush1.bf16.msra.mxu0 %v129
    %148 = vmatprep.subr.bf16.mxu0 0
    %149 = vmatpush1.bf16.msra.mxu0 %v130
    %150 = vmatprep.subr.bf16.mxu0 0
    %151 = vmatpush1.bf16.msra.mxu0 %v131
    %152 = vmatprep.subr.bf16.mxu0 0
    %153 = vmatpush1.bf16.msra.mxu0 %v132
    %154 = vmatprep.subr.bf16.mxu0 0
    %155 = vmatpush1.bf16.msra.mxu0 %v133
    %156 = vmatprep.subr.bf16.mxu0 0
    %157 = vmatpush1.bf16.msra.mxu0 %v134
    %158 = vmatprep.subr.bf16.mxu0 0
    %159 = vmatpush1.bf16.msra.mxu0 %v135
    %160 = vmatprep.subr.bf16.mxu0 0
    %161 = vmatpush1.bf16.msra.mxu0 0
    %162 = vmatprep.subr.bf16.mxu0 0
    %163 = vmatpush1.bf16.msra.mxu0 0
    %164 = vmatprep.subr.bf16.mxu0 0
    %165 = vmatpush1.bf16.msra.mxu0 0
    %166 = vmatprep.subr.bf16.mxu0 0
    %167 = vmatpush1.bf16.msra.mxu0 0
    %168 = vmatprep.subr.bf16.mxu0 0
    %169 = vmatpush1.bf16.msra.mxu0 0
    %170 = vmatprep.subr.bf16.mxu0 0
    %171 = vmatpush1.bf16.msra.mxu0 0
    %172 = vmatprep.subr.bf16.mxu0 0
    %173 = vmatpush1.bf16.msra.mxu0 0
    %174 = vmatprep.subr.bf16.mxu0 0
    %175 = vmatpush1.bf16.msra.mxu0 0
    %176 = vmatprep.mubr.bf16.mxu0 0
    %177 = vmatmul.mubr.bf16.gmra.mrb[0].mxu0 %v94
    %v178 = vpop.f32.mrb[0].mxu0
    %v179 = vadd.f32 %v88, %v178
    %v180 = vpop.f32.mrb[0].mxu0
    %v181 = vpop.f32.mrb[0].mxu0
    %v182 = vadd.f32 %v88, %v181
    %v183 = vpop.f32.mrb[0].mxu0
    %184 = vdwg.mxu0
    %v185 = vtanh.pop %v179
    %v186 = vtanh.pop %v182
    %v187 = vpack.c.bf16 %v186, %v185
    %v188 = vld [vmem:[#allocation4] sm:$0xf]
    %v189 = vld [vmem:[#allocation4 + $0x4] sm:$0xf]
    %v190 = vld [vmem:[#allocation4 + $0x8] sm:$0xf]
    %v191 = vld [vmem:[#allocation4 + $0xc] sm:$0xf]
    %v192 = vld [vmem:[#allocation4 + $0x10] sm:$0xf]
    %v193 = vld [vmem:[#allocation4 + $0x14] sm:$0xf]
    %v194 = vld [vmem:[#allocation4 + $0x18] sm:$0xf]
    %v195 = vld [vmem:[#allocation4 + $0x1c] sm:$0xf]
    %v196 = vld [vmem:[#allocation4 + $0x20] sm:$0xf]
    %v197 = vld [vmem:[#allocation4 + $0x24] sm:$0xf]
    %v198 = vld [vmem:[#allocation4 + $0x28] sm:$0xf]
    %v199 = vld [vmem:[#allocation4 + $0x2c] sm:$0xf]
    %v200 = vld [vmem:[#allocation4 + $0x30] sm:$0xf]
    %v201 = vld [vmem:[#allocation4 + $0x34] sm:$0xf]
    %v202 = vld [vmem:[#allocation4 + $0x38] sm:$0xf]
    %v203 = vld [vmem:[#allocation4 + $0x3c] sm:$0xf]
    %s204 = scalar_lea.vmem %s2, 1
    %v205 = vld [vmem:[%s204] sm:$0x1]
    %v207 = vlaneseq
    %v208 = vshrl.u32 %v207, 7
    %v209 = vsub.s32 0, %v208
    %v210 = vrot.slane %v205, %v209
    %v228 = vunpack.c.l.b16 %v188
    %v229 = vunpack.c.l.b16 %v189
    %v230 = vunpack.c.l.b16 %v190
    %v231 = vunpack.c.l.b16 %v191
    %v232 = vunpack.c.l.b16 %v192
    %v233 = vunpack.c.l.b16 %v193
    %v234 = vunpack.c.l.b16 %v194
    %v235 = vunpack.c.l.b16 %v195
    %v236 = vunpack.c.l.b16 %v196
    %v237 = vunpack.c.l.b16 %v197
    %v238 = vunpack.c.l.b16 %v198
    %v239 = vunpack.c.l.b16 %v199
    %v240 = vunpack.c.l.b16 %v200
    %v241 = vunpack.c.l.b16 %v201
    %v242 = vunpack.c.l.b16 %v202
    %v243 = vunpack.c.l.b16 %v203
    %v244 = vpack.c.b16 %v229, %v228
    %v245 = vpack.c.b16 %v231, %v230
    %v246 = vpack.c.b16 %v233, %v232
    %v247 = vpack.c.b16 %v235, %v234
    %v248 = vpack.c.b16 %v237, %v236
    %v249 = vpack.c.b16 %v239, %v238
    %v250 = vpack.c.b16 %v241, %v240
    %v251 = vpack.c.b16 %v243, %v242
    %260 = vmatprep.subr.bf16.mxu0 0
    %261 = vmatpush1.bf16.msra.mxu0 %v244
    %262 = vmatprep.subr.bf16.mxu0 0
    %263 = vmatpush1.bf16.msra.mxu0 %v245
    %264 = vmatprep.subr.bf16.mxu0 0
    %265 = vmatpush1.bf16.msra.mxu0 %v246
    %266 = vmatprep.subr.bf16.mxu0 0
    %267 = vmatpush1.bf16.msra.mxu0 %v247
    %268 = vmatprep.subr.bf16.mxu0 0
    %269 = vmatpush1.bf16.msra.mxu0 %v248
    %270 = vmatprep.subr.bf16.mxu0 0
    %271 = vmatpush1.bf16.msra.mxu0 %v249
    %272 = vmatprep.subr.bf16.mxu0 0
    %273 = vmatpush1.bf16.msra.mxu0 %v250
    %274 = vmatprep.subr.bf16.mxu0 0
    %275 = vmatpush1.bf16.msra.mxu0 %v251
    %276 = vmatprep.subr.bf16.mxu0 0
    %277 = vmatpush1.bf16.msra.mxu0 0
    %278 = vmatprep.subr.bf16.mxu0 0
    %279 = vmatpush1.bf16.msra.mxu0 0
    %280 = vmatprep.subr.bf16.mxu0 0
    %281 = vmatpush1.bf16.msra.mxu0 0
    %282 = vmatprep.subr.bf16.mxu0 0
    %283 = vmatpush1.bf16.msra.mxu0 0
    %284 = vmatprep.subr.bf16.mxu0 0
    %285 = vmatpush1.bf16.msra.mxu0 0
    %286 = vmatprep.subr.bf16.mxu0 0
    %287 = vmatpush1.bf16.msra.mxu0 0
    %288 = vmatprep.subr.bf16.mxu0 0
    %289 = vmatpush1.bf16.msra.mxu0 0
    %290 = vmatprep.subr.bf16.mxu0 0
    %291 = vmatpush1.bf16.msra.mxu0 0
    %292 = vmatprep.mubr.bf16.mxu0 0
    %293 = vmatmul.mubr.bf16.gmra.mrb[0].mxu0 %v187
    %v294 = vpop.f32.mrb[0].mxu0
    %v295 = vadd.f32 %v210, %v294
    %v296 = vpop.f32.mrb[0].mxu0
    %v297 = vpop.f32.mrb[0].mxu0
    %v298 = vadd.f32 %v210, %v297
    %v299 = vpop.f32.mrb[0].mxu0
    %300 = vdwg.mxu0
    %v301 = vtanh.pop %v295
    %v302 = vtanh.pop %v298
    %v303 = vpack.c.bf16 %v302, %v301
    %s304 = scalar_lea.vmem [#allocation4], 64
    %v305 = vld [vmem:[%s304] sm:$0xf]
    %v306 = vld [vmem:[%s304 + $0x4] sm:$0xf]
    %v307 = vld [vmem:[%s304 + $0x8] sm:$0xf]
    %v308 = vld [vmem:[%s304 + $0xc] sm:$0xf]
    %v309 = vld [vmem:[%s304 + $0x10] sm:$0xf]
    %v310 = vld [vmem:[%s304 + $0x14] sm:$0xf]
    %v311 = vld [vmem:[%s304 + $0x18] sm:$0xf]
    %v312 = vld [vmem:[%s304 + $0x1c] sm:$0xf]
    %v313 = vld [vmem:[%s304 + $0x20] sm:$0xf]
    %v314 = vld [vmem:[%s304 + $0x24] sm:$0xf]
    %v315 = vld [vmem:[%s304 + $0x28] sm:$0xf]
    %v316 = vld [vmem:[%s304 + $0x2c] sm:$0xf]
    %v317 = vld [vmem:[%s304 + $0x30] sm:$0xf]
    %v318 = vld [vmem:[%s304 + $0x34] sm:$0xf]
    %v319 = vld [vmem:[%s304 + $0x38] sm:$0xf]
    %v320 = vld [vmem:[%s304 + $0x3c] sm:$0xf]
    %s321 = scalar_lea.vmem %s2, 2
    %v322 = vld [vmem:[%s321] sm:$0x1]
    %v324 = vlaneseq
    %v325 = vshrl.u32 %v324, 7
    %v326 = vsub.s32 0, %v325
    %v327 = vrot.slane %v322, %v326
    %v345 = vunpack.c.l.b16 %v305
    %v346 = vunpack.c.l.b16 %v306
    %v347 = vunpack.c.l.b16 %v307
    %v348 = vunpack.c.l.b16 %v308
    %v349 = vunpack.c.l.b16 %v309
    %v350 = vunpack.c.l.b16 %v310
    %v351 = vunpack.c.l.b16 %v311
    %v352 = vunpack.c.l.b16 %v312
    %v353 = vunpack.c.l.b16 %v313
    %v354 = vunpack.c.l.b16 %v314
    %v355 = vunpack.c.l.b16 %v315
    %v356 = vunpack.c.l.b16 %v316
    %v357 = vunpack.c.l.b16 %v317
    %v358 = vunpack.c.l.b16 %v318
    %v359 = vunpack.c.l.b16 %v319
    %v360 = vunpack.c.l.b16 %v320
    %v361 = vpack.c.b16 %v346, %v345
    %v362 = vpack.c.b16 %v348, %v347
    %v363 = vpack.c.b16 %v350, %v349
    %v364 = vpack.c.b16 %v352, %v351
    %v365 = vpack.c.b16 %v354, %v353
    %v366 = vpack.c.b16 %v356, %v355
    %v367 = vpack.c.b16 %v358, %v357
    %v368 = vpack.c.b16 %v360, %v359
    %377 = vmatprep.subr.bf16.mxu0 0
    %378 = vmatpush1.bf16.msra.mxu0 %v361
    %379 = vmatprep.subr.bf16.mxu0 0
    %380 = vmatpush1.bf16.msra.mxu0 %v362
    %381 = vmatprep.subr.bf16.mxu0 0
    %382 = vmatpush1.bf16.msra.mxu0 %v363
    %383 = vmatprep.subr.bf16.mxu0 0
    %384 = vmatpush1.bf16.msra.mxu0 %v364
    %385 = vmatprep.subr.bf16.mxu0 0
    %386 = vmatpush1.bf16.msra.mxu0 %v365
    %387 = vmatprep.subr.bf16.mxu0 0
    %388 = vmatpush1.bf16.msra.mxu0 %v366
    %389 = vmatprep.subr.bf16.mxu0 0
    %390 = vmatpush1.bf16.msra.mxu0 %v367
    %391 = vmatprep.subr.bf16.mxu0 0
    %392 = vmatpush1.bf16.msra.mxu0 %v368
    %393 = vmatprep.subr.bf16.mxu0 0
    %394 = vmatpush1.bf16.msra.mxu0 0
    %395 = vmatprep.subr.bf16.mxu0 0
    %396 = vmatpush1.bf16.msra.mxu0 0
    %397 = vmatprep.subr.bf16.mxu0 0
    %398 = vmatpush1.bf16.msra.mxu0 0
    %399 = vmatprep.subr.bf16.mxu0 0
    %400 = vmatpush1.bf16.msra.mxu0 0
    %401 = vmatprep.subr.bf16.mxu0 0
    %402 = vmatpush1.bf16.msra.mxu0 0
    %403 = vmatprep.subr.bf16.mxu0 0
    %404 = vmatpush1.bf16.msra.mxu0 0
    %405 = vmatprep.subr.bf16.mxu0 0
    %406 = vmatpush1.bf16.msra.mxu0 0
    %407 = vmatprep.subr.bf16.mxu0 0
    %408 = vmatpush1.bf16.msra.mxu0 0
    %409 = vmatprep.mubr.bf16.mxu0 0
    %410 = vmatmul.mubr.bf16.gmra.mrb[0].mxu0 %v303
    %v411 = vpop.f32.mrb[0].mxu0
    %v412 = vadd.f32 %v327, %v411
    %v413 = vpop.f32.mrb[0].mxu0
    %v414 = vpop.f32.mrb[0].mxu0
    %v415 = vadd.f32 %v327, %v414
    %v416 = vpop.f32.mrb[0].mxu0
    %417 = vdwg.mxu0
    %v418 = vtanh.pop %v412
    %v419 = vtanh.pop %v415
    %v420 = vpack.c.bf16 %v419, %v418
    %v421 = vld [vmem:[#allocation6] sm:$0xf]
    %v422 = vld [vmem:[#allocation6 + $0x4] sm:$0xf]
    %v423 = vld [vmem:[#allocation6 + $0x8] sm:$0xf]
    %v424 = vld [vmem:[#allocation6 + $0xc] sm:$0xf]
    %v425 = vld [vmem:[#allocation6 + $0x10] sm:$0xf]
    %v426 = vld [vmem:[#allocation6 + $0x14] sm:$0xf]
    %v427 = vld [vmem:[#allocation6 + $0x18] sm:$0xf]
    %v428 = vld [vmem:[#allocation6 + $0x1c] sm:$0xf]
    %v429 = vld [vmem:[#allocation6 + $0x20] sm:$0xf]
    %v430 = vld [vmem:[#allocation6 + $0x24] sm:$0xf]
    %v431 = vld [vmem:[#allocation6 + $0x28] sm:$0xf]
    %v432 = vld [vmem:[#allocation6 + $0x2c] sm:$0xf]
    %v433 = vld [vmem:[#allocation6 + $0x30] sm:$0xf]
    %v434 = vld [vmem:[#allocation6 + $0x34] sm:$0xf]
    %v435 = vld [vmem:[#allocation6 + $0x38] sm:$0xf]
    %v436 = vld [vmem:[#allocation6 + $0x3c] sm:$0xf]
    %v437 = vld [vmem:[%s5] sm:$0x1]
    %v439 = vlaneseq
    %v440 = vshrl.u32 %v439, 7
    %v441 = vsub.s32 0, %v440
    %v442 = vrot.slane %v437, %v441
    %v460 = vunpack.c.l.b16 %v421
    %v461 = vunpack.c.l.b16 %v422
    %v462 = vunpack.c.l.b16 %v423
    %v463 = vunpack.c.l.b16 %v424
    %v464 = vunpack.c.l.b16 %v425
    %v465 = vunpack.c.l.b16 %v426
    %v466 = vunpack.c.l.b16 %v427
    %v467 = vunpack.c.l.b16 %v428
    %v468 = vunpack.c.l.b16 %v429
    %v469 = vunpack.c.l.b16 %v430
    %v470 = vunpack.c.l.b16 %v431
    %v471 = vunpack.c.l.b16 %v432
    %v472 = vunpack.c.l.b16 %v433
    %v473 = vunpack.c.l.b16 %v434
    %v474 = vunpack.c.l.b16 %v435
    %v475 = vunpack.c.l.b16 %v436
    %v476 = vpack.c.b16 %v461, %v460
    %v477 = vpack.c.b16 %v463, %v462
    %v478 = vpack.c.b16 %v465, %v464
    %v479 = vpack.c.b16 %v467, %v466
    %v480 = vpack.c.b16 %v469, %v468
    %v481 = vpack.c.b16 %v471, %v470
    %v482 = vpack.c.b16 %v473, %v472
    %v483 = vpack.c.b16 %v475, %v474
    %492 = vmatprep.subr.bf16.mxu0 0
    %493 = vmatpush1.bf16.msra.mxu0 %v476
    %494 = vmatprep.subr.bf16.mxu0 0
    %495 = vmatpush1.bf16.msra.mxu0 %v477
    %496 = vmatprep.subr.bf16.mxu0 0
    %497 = vmatpush1.bf16.msra.mxu0 %v478
    %498 = vmatprep.subr.bf16.mxu0 0
    %499 = vmatpush1.bf16.msra.mxu0 %v479
    %500 = vmatprep.subr.bf16.mxu0 0
    %501 = vmatpush1.bf16.msra.mxu0 %v480
    %502 = vmatprep.subr.bf16.mxu0 0
    %503 = vmatpush1.bf16.msra.mxu0 %v481
    %504 = vmatprep.subr.bf16.mxu0 0
    %505 = vmatpush1.bf16.msra.mxu0 %v482
    %506 = vmatprep.subr.bf16.mxu0 0
    %507 = vmatpush1.bf16.msra.mxu0 %v483
    %508 = vmatprep.subr.bf16.mxu0 0
    %509 = vmatpush1.bf16.msra.mxu0 0
    %510 = vmatprep.subr.bf16.mxu0 0
    %511 = vmatpush1.bf16.msra.mxu0 0
    %512 = vmatprep.subr.bf16.mxu0 0
    %513 = vmatpush1.bf16.msra.mxu0 0
    %514 = vmatprep.subr.bf16.mxu0 0
    %515 = vmatpush1.bf16.msra.mxu0 0
    %516 = vmatprep.subr.bf16.mxu0 0
    %517 = vmatpush1.bf16.msra.mxu0 0
    %518 = vmatprep.subr.bf16.mxu0 0
    %519 = vmatpush1.bf16.msra.mxu0 0
    %520 = vmatprep.subr.bf16.mxu0 0
    %521 = vmatpush1.bf16.msra.mxu0 0
    %522 = vmatprep.subr.bf16.mxu0 0
    %523 = vmatpush1.bf16.msra.mxu0 0
    %524 = vmatprep.mubr.bf16.mxu0 0
    %525 = vmatmul.mubr.bf16.gmra.mrb[0].mxu0 %v420
    %v526 = vpop.f32.mrb[0].mxu0
    %v527 = vadd.f32 %v442, %v526
    %v528 = vpop.f32.mrb[0].mxu0
    %v529 = vpop.f32.mrb[0].mxu0
    %v530 = vadd.f32 %v442, %v529
    %v531 = vpop.f32.mrb[0].mxu0
    %532 = vdwg.mxu0
    %533 = vst [vmem:[%s6] sm:$0xff] %v527
    %534 = vst [vmem:[%s6 + $0x8] sm:$0xff] %v530
    // Predicated region
    $region38: #{_mlp_forward_packed.1} parent=1 // pred_check
      _
    $region39: #{_mlp_forward_packed.1} parent=1 // pred_check_branch
      %536 = sbr.rel (0) target = $region41
    $region40: #{_mlp_forward_packed.1} parent=1 // pred_region
      _
    $region41: #{_mlp_forward_packed.1} parent=1 // pred_fallthru
      _
    // Predicated region
    $region42: #{_mlp_forward_packed.1} parent=1 // pred_check
      _
    $region43: #{_mlp_forward_packed.1} parent=1 // pred_check_branch
      %538 = sbr.rel (0) target = $region45
    $region44: #{_mlp_forward_packed.1} parent=1 // pred_region
      _
    $region45: #{_mlp_forward_packed.1} parent=1 // pred_fallthru
      _
    %539 = vsyncpa [#allocation3], 1
    %540 = vsyncpa [#allocation5], 1

</llo_original>
